<compile_context>
chip_gen: v7x
topology: tpu7x:2x2x1
jax: 0.10.0
libtpu: 0.0.40
codegen_flags: <defaults>
</compile_context>

<pallas_src>
import functools

import jax
import jax.numpy as jnp
from jax import lax
from jax.experimental import pallas as pl
from jax.experimental.pallas import tpu as pltpu


def _fit_index_kernel(y_ref, yhat_ref, out_ref, sum_y_ref, err_ref, std_ref,
                      *, washout, seq_len, tile_rows, first_blk, num_tiles,
                      mask_first, mask_last):
    """Grid: (batch_block, pass, time_tile)."""
    p = pl.program_id(1)          # 0: sums pass, 1: std pass
    t = pl.program_id(2)          # time tile index (relative to first_blk)

    tp = seq_len - washout        # number of valid (post-washout) time steps
    y = y_ref[...].astype(jnp.float32)                                # (Bb, TT, C)

    def valid_rows():
        # (1, TT, 1) bool: True for global rows in [washout, seq_len).
        t0 = (t + first_blk) * tile_rows
        row = t0 + lax.broadcasted_iota(jnp.int32, (1, tile_rows, 1), 1)
        return jnp.logical_and(row >= washout, row < seq_len)

    # ---- per-batch-block accumulator init ----------------------------------
    @pl.when(jnp.logical_and(p == 0, t == 0))
    def _init_pass0():
        sum_y_ref[...] = jnp.zeros_like(sum_y_ref)
        err_ref[...] = jnp.zeros_like(err_ref)

    @pl.when(jnp.logical_and(p == 1, t == 0))
    def _init_pass1():
        std_ref[...] = jnp.zeros_like(std_ref)
        # Hoist y_avg: turn the pass-0 sum into the mean once per batch block.
        sum_y_ref[...] = sum_y_ref[...] * (1.0 / tp)

    # ---- pass bodies (masked variant only runs on boundary tiles) ----------
    def pass0(masked):
        def body():
            yhat = yhat_ref[...].astype(jnp.float32)
            diff = y - yhat
            rmse = jnp.sqrt(jnp.mean(diff * diff, axis=2, keepdims=True))  # (Bb,TT,1)
            y_m = y
            if masked:
                valid = valid_rows()
                # Select AFTER sqrt/mean: garbage in padded rows never leaks.
                rmse = jnp.where(valid, rmse, 0.0)
                y_m = jnp.where(valid, y, 0.0)
            err_ref[...] += jnp.sum(rmse, axis=1, keepdims=True)           # (Bb,1,1)
            sum_y_ref[...] += jnp.sum(y_m, axis=1, keepdims=True)          # (Bb,1,C)
        return body

    def pass1(masked):
        def body():
            dev = y - sum_y_ref[...]                                       # y - y_avg
            std_t = jnp.sqrt(jnp.mean(dev * dev, axis=2, keepdims=True))   # (Bb,TT,1)
            if masked:
                std_t = jnp.where(valid_rows(), std_t, 0.0)
            std_ref[...] += jnp.sum(std_t, axis=1, keepdims=True)          # (Bb,1,1)
        return body

    any_mask = mask_first or mask_last
    always_mask = any_mask and (num_tiles == 1 or (mask_first and mask_last
                                                   and num_tiles <= 2))
    if not any_mask:
        # Statically, no tile ever needs boundary masking.
        pl.when(p == 0)(pass0(False))
        pl.when(p == 1)(pass1(False))
    elif always_mask:
        pl.when(p == 0)(pass0(True))
        pl.when(p == 1)(pass1(True))
    else:
        conds = []
        if mask_first:
            conds.append(t == 0)
        if mask_last:
            conds.append(t == num_tiles - 1)
        needs_mask = functools.reduce(jnp.logical_or, conds)
        not_mask = jnp.logical_not(needs_mask)
        pl.when(jnp.logical_and(p == 0, needs_mask))(pass0(True))
        pl.when(jnp.logical_and(p == 0, not_mask))(pass0(False))
        pl.when(jnp.logical_and(p == 1, needs_mask))(pass1(True))
        pl.when(jnp.logical_and(p == 1, not_mask))(pass1(False))

    # ---- finalize -----------------------------------------------------------
    @pl.when(jnp.logical_and(p == 1, t == num_tiles - 1))
    def _finalize():
        # mean_t(rmse)/mean_t(std_t) == sum_t(rmse)/sum_t(std_t):
        # a single exact divide per batch (keeps 1e-5 tolerance vs reference).
        out_ref[...] = err_ref[...] / std_ref[...]


def _plan_tiles(B, T, C, dtype):
    """Pick (tile_rows, batch_block, vmem_limit_bytes) from the chip's VMEM."""
    itemsize = jnp.dtype(dtype).itemsize
    # Sublane packing of the second-to-last dim: 8 rows (f32), 16 (bf16), 32 (8-bit).
    pack = 8 * max(1, 4 // itemsize)

    try:
        vmem = int(getattr(pltpu.get_tpu_info(), "vmem_capacity_bytes",
                           64 * 1024 * 1024))
    except Exception:  # interpret mode / no-TPU fallback: be conservative
        vmem = 64 * 1024 * 1024

    # ~96 MiB scoped VMEM on 128 MiB parts (v5e/v6e), ~48 MiB on v7x (64 MiB).
    vmem_limit = min((vmem * 3) // 4, 96 * 1024 * 1024)

    # Live VMEM per (batch, time-row): 2 inputs x 2 pipeline buffers at the
    # input dtype, plus ~3 f32 temporaries (y cast, y_hat cast, diff/dev).
    bytes_per_row = C * (4 * itemsize + 3 * 4)
    budget = vmem_limit // 2                      # headroom for scratch/output/code
    max_rows = max(pack, budget // bytes_per_row)

    if T <= max_rows:
        # One tile spans the whole time extent: y is fetched once per batch block
        # and reused across both passes (the pipeline elides the second fetch).
        tile_rows = T
        bb_cap = max(1, max_rows // T)
        batch_block = 1
        for d in range(1, B + 1):                 # largest divisor of B <= bb_cap
            if B % d == 0 and d <= bb_cap:
                batch_block = d
    else:
        tile_rows = max(pack, (max_rows // pack) * pack)
        batch_block = 1
    return tile_rows, batch_block, vmem_limit


def fit_index(y: jax.Array, y_hat: jax.Array, washout: int = 0) -> jax.Array:
    """FIT index. y, y_hat: (B, T, C). Returns float32 scalar."""
    B, T, C = y.shape
    if y_hat.shape != (B, T, C):
        raise ValueError(f"shape mismatch: {y.shape} vs {y_hat.shape}")
    if not (0 <= washout < T):
        raise ValueError(f"washout must be in [0, T); got {washout}, T={T}")

    tile_rows, bb, vmem_limit = _plan_tiles(B, T, C, y.dtype)
    first_blk = washout // tile_rows              # whole tiles before washout
    nt = pl.cdiv(T, tile_rows) - first_blk        # >= 1 since washout < T
    mask_first = (washout % tile_rows) != 0       # washout cuts into tile 0
    mask_last = (T % tile_rows) != 0              # ragged final tile

    kernel = functools.partial(
        _fit_index_kernel,
        washout=washout, seq_len=T, tile_rows=tile_rows, first_blk=first_blk,
        num_tiles=nt, mask_first=mask_first, mask_last=mask_last)

    # TODO(synk): for B == 1 on v7x, split the time range across the two
    # TensorCores (separate accumulators combined in the epilogue) instead of
    # relying on the (then trivial) "parallel" batch axis.
    per_batch = pl.pallas_call(
        kernel,
        out_shape=jax.ShapeDtypeStruct((B, 1, 1), jnp.float32),
        grid_spec=pltpu.PrefetchScalarGridSpec(
            num_scalar_prefetch=0,
            grid=(B // bb, 2, nt),
            in_specs=[
                # y: streamed in both passes (second fetch elided when nt == 1).
                pl.BlockSpec((bb, tile_rows, C),
                             lambda b, p, t: (b, t + first_blk, 0)),
                # y_hat: streamed in pass 0; during pass 1 it parks on the tile
                # last fetched in pass 0, so no extra DMA at the pass transition.
                pl.BlockSpec((bb, tile_rows, C),
                             lambda b, p, t: (b,
                                              first_blk + t * (1 - p)
                                              + (nt - 1) * p,
                                              0)),
            ],
            out_specs=pl.BlockSpec((bb, 1, 1), lambda b, p, t: (b, 0, 0)),
            scratch_shapes=[
                pltpu.VMEM((bb, 1, C), jnp.float32),   # per-batch sum_t(y) / y_avg
                pltpu.VMEM((bb, 1, 1), jnp.float32),   # per-batch sum_t(rmse)
                pltpu.VMEM((bb, 1, 1), jnp.float32),   # per-batch sum_t(std_t)
            ],
        ),
        compiler_params=pltpu.CompilerParams(
            dimension_semantics=("parallel", "arbitrary", "arbitrary"),
            vmem_limit_bytes=vmem_limit,
        ),
    )(y, y_hat)

    res = jnp.mean(per_batch)                     # mean over batches
    return (100.0 * (1.0 - res)).astype(jnp.float32)


def _fit_index_ref(y, y_hat, washout: int = 0):
    """Pure-JAX reference mirroring the PyTorch forward."""
    y = y[:, washout:, :].astype(jnp.float32)
    y_hat = y_hat[:, washout:, :].astype(jnp.float32)
    error_rmse = jnp.sqrt(jnp.mean((y - y_hat) ** 2, axis=2))
    y_avg = jnp.mean(y, axis=1, keepdims=True)
    avg_std = jnp.mean(jnp.sqrt(jnp.mean((y - y_avg) ** 2, axis=2)), axis=1,
                       keepdims=True)
    res = jnp.mean(error_rmse / avg_std)
    return 100.0 * (1.0 - res)


if __name__ == "__main__":
    key = jax.random.PRNGKey(0)
    k1, k2 = jax.random.split(key)

    B, T, C = 2, 16, 32
    washout = 2

    y = jax.random.normal(k1, (B, T, C), dtype=jnp.float32)
    # y_hat = y + small noise so the metric is near (but below) 100.
    y_hat = y + 0.1 * jax.random.normal(k2, (B, T, C), dtype=jnp.float32)

    out = jax.block_until_ready(fit_index(y, y_hat, washout=washout))
    ref = jax.block_until_ready(_fit_index_ref(y, y_hat, washout=washout))
    assert jnp.allclose(out, ref, rtol=1e-5, atol=1e-5), (out, ref)

    print("KERNEL_OK")
</pallas_src>

<mosaic_0001>
module attributes {stable_mosaic.version = 11 : i64} {
  func.func @_fit_index_kernel(%arg0: i32, %arg1: i32, %arg2: i32, %arg3: memref<2x16x32xf32, #tpu.memory_space<vmem>>, %arg4: memref<2x16x32xf32, #tpu.memory_space<vmem>>, %arg5: memref<2x1x1xf32, #tpu.memory_space<vmem>>, %arg6: memref<2x1x32xf32, #tpu.memory_space<vmem>>, %arg7: memref<2x1x1xf32, #tpu.memory_space<vmem>>, %arg8: memref<2x1x1xf32, #tpu.memory_space<vmem>>) attributes {dimension_semantics = [#tpu.dimension_semantics<parallel>, #tpu.dimension_semantics<arbitrary>, #tpu.dimension_semantics<arbitrary>], iteration_bounds = array<i64: 1, 2, 1>, scalar_prefetch = 0 : i64, scratch_operands = 3 : i64, tpu.core_type = #tpu.core_type<tc>, window_params = [{transform_indices = @transform_0, window_bounds = array<i64: 2, 16, 32>}, {transform_indices = @transform_1, window_bounds = array<i64: 2, 16, 32>}, {transform_indices = @transform_2, window_bounds = array<i64: 2, 1, 1>}]} {
    %c0 = arith.constant 0 : index
    %c0_0 = arith.constant 0 : index
    %c0_1 = arith.constant 0 : index
    %0 = vector.load %arg3[%c0, %c0_0, %c0_1] : memref<2x16x32xf32, #tpu.memory_space<vmem>>, vector<2x16x32xf32>
    %c0_i32 = arith.constant 0 : i32
    %1 = arith.cmpi eq, %arg1, %c0_i32 : i32
    %c0_i32_2 = arith.constant 0 : i32
    %2 = arith.cmpi eq, %arg2, %c0_i32_2 : i32
    %3 = arith.andi %1, %2 : i1
    %4 = arith.extui %3 : i1 to i32
    %c0_i32_3 = arith.constant 0 : i32
    %5 = arith.cmpi ne, %4, %c0_i32_3 : i32
    scf.if %5 {
      %cst = arith.constant 0.000000e+00 : f32
      %22 = vector.broadcast %cst : f32 to vector<2x1x32xf32>
      %c0_13 = arith.constant 0 : index
      %c0_14 = arith.constant 0 : index
      %c0_15 = arith.constant 0 : index
      %23 = vector.load %arg6[%c0_13, %c0_14, %c0_15] : memref<2x1x32xf32, #tpu.memory_space<vmem>>, vector<2x1x32xf32>
      tpu.vector_store %arg6[%c0_13, %c0_14, %c0_15], %22 {strides = array<i32>} : memref<2x1x32xf32, #tpu.memory_space<vmem>>, vector<2x1x32xf32>,
      %cst_16 = arith.constant 0.000000e+00 : f32
      %24 = vector.broadcast %cst_16 : f32 to vector<2x1x1xf32>
      %c0_17 = arith.constant 0 : index
      %c0_18 = arith.constant 0 : index
      %c0_19 = arith.constant 0 : index
      %25 = vector.load %arg7[%c0_17, %c0_18, %c0_19] : memref<2x1x1xf32, #tpu.memory_space<vmem>>, vector<2x1x1xf32>
      tpu.vector_store %arg7[%c0_17, %c0_18, %c0_19], %24 {strides = array<i32>} : memref<2x1x1xf32, #tpu.memory_space<vmem>>, vector<2x1x1xf32>,
    } else {
    }
    %c1_i32 = arith.constant 1 : i32
    %6 = arith.cmpi eq, %arg1, %c1_i32 : i32
    %c0_i32_4 = arith.constant 0 : i32
    %7 = arith.cmpi eq, %arg2, %c0_i32_4 : i32
    %8 = arith.andi %6, %7 : i1
    %9 = arith.extui %8 : i1 to i32
    %c0_i32_5 = arith.constant 0 : i32
    %10 = arith.cmpi ne, %9, %c0_i32_5 : i32
    scf.if %10 {
      %cst = arith.constant 0.000000e+00 : f32
      %22 = vector.broadcast %cst : f32 to vector<2x1x1xf32>
      %c0_13 = arith.constant 0 : index
      %c0_14 = arith.constant 0 : index
      %c0_15 = arith.constant 0 : index
      %23 = vector.load %arg8[%c0_13, %c0_14, %c0_15] : memref<2x1x1xf32, #tpu.memory_space<vmem>>, vector<2x1x1xf32>
      tpu.vector_store %arg8[%c0_13, %c0_14, %c0_15], %22 {strides = array<i32>} : memref<2x1x1xf32, #tpu.memory_space<vmem>>, vector<2x1x1xf32>,
      %c0_16 = arith.constant 0 : index
      %c0_17 = arith.constant 0 : index
      %c0_18 = arith.constant 0 : index
      %24 = vector.load %arg6[%c0_16, %c0_17, %c0_18] : memref<2x1x32xf32, #tpu.memory_space<vmem>>, vector<2x1x32xf32>
      %cst_19 = arith.constant 0.0714285746 : f32
      %25 = vector.broadcast %cst_19 : f32 to vector<2x1x32xf32>
      %26 = arith.mulf %24, %25 : vector<2x1x32xf32>
      %c0_20 = arith.constant 0 : index
      %c0_21 = arith.constant 0 : index
      %c0_22 = arith.constant 0 : index
      %27 = vector.load %arg6[%c0_20, %c0_21, %c0_22] : memref<2x1x32xf32, #tpu.memory_space<vmem>>, vector<2x1x32xf32>
      tpu.vector_store %arg6[%c0_20, %c0_21, %c0_22], %26 {strides = array<i32>} : memref<2x1x32xf32, #tpu.memory_space<vmem>>, vector<2x1x32xf32>,
    } else {
    }
    %c0_i32_6 = arith.constant 0 : i32
    %11 = arith.cmpi eq, %arg1, %c0_i32_6 : i32
    %12 = arith.extui %11 : i1 to i32
    %c0_i32_7 = arith.constant 0 : i32
    %13 = arith.cmpi ne, %12, %c0_i32_7 : i32
    scf.if %13 {
      %c0_13 = arith.constant 0 : index
      %c0_14 = arith.constant 0 : index
      %c0_15 = arith.constant 0 : index
      %22 = vector.load %arg4[%c0_13, %c0_14, %c0_15] : memref<2x16x32xf32, #tpu.memory_space<vmem>>, vector<2x16x32xf32>
      %23 = arith.subf %0, %22 : vector<2x16x32xf32>
      %24 = arith.mulf %23, %23 : vector<2x16x32xf32>
      %cst = arith.constant dense<0.000000e+00> : vector<2x16xf32>
      %25 = vector.multi_reduction <add>, %24, %cst [2] : vector<2x16x32xf32> to vector<2x16xf32>
      %26 = vector.shape_cast %25 : vector<2x16xf32> to vector<2x16x1xf32>
      %cst_16 = arith.constant 3.200000e+01 : f32
      %27 = vector.broadcast %cst_16 : f32 to vector<2x16x1xf32>
      %28 = arith.divf %26, %27 : vector<2x16x1xf32>
      %29 = math.sqrt %28 : vector<2x16x1xf32>
      %c0_i32_17 = arith.constant 0 : i32
      %30 = arith.addi %arg2, %c0_i32_17 : i32
      %c16_i32 = arith.constant 16 : i32
      %31 = arith.muli %30, %c16_i32 : i32
      %32 = tpu.iota {dimensions = array<i32: 1>} : vector<1x16x1xi32>
      %33 = vector.broadcast %31 : i32 to vector<1x16x1xi32>
      %34 = arith.addi %33, %32 : vector<1x16x1xi32>
      %c2_i32 = arith.constant 2 : i32
      %35 = vector.broadcast %c2_i32 : i32 to vector<1x16x1xi32>
      %36 = arith.cmpi sge, %34, %35 : vector<1x16x1xi32>
      %c16_i32_18 = arith.constant 16 : i32
      %37 = vector.broadcast %c16_i32_18 : i32 to vector<1x16x1xi32>
      %38 = arith.cmpi slt, %34, %37 : vector<1x16x1xi32>
      %39 = arith.andi %36, %38 : vector<1x16x1xi1>
      %cst_19 = arith.constant 0.000000e+00 : f32
      %40 = vector.shape_cast %39 : vector<1x16x1xi1> to vector<1x16x1xi1>
      %41 = vector.broadcast %40 : vector<1x16x1xi1> to vector<2x16x1xi1>
      %42 = vector.broadcast %cst_19 : f32 to vector<2x16x1xf32>
      %43 = arith.select %41, %29, %42 : vector<2x16x1xi1>, vector<2x16x1xf32>
      %cst_20 = arith.constant 0.000000e+00 : f32
      %44 = vector.shape_cast %39 : vector<1x16x1xi1> to vector<1x16x1xi1>
      %45 = vector.broadcast %44 : vector<1x16x1xi1> to vector<2x16x32xi1>
      %46 = vector.broadcast %cst_20 : f32 to vector<2x16x32xf32>
      %47 = arith.select %45, %0, %46 : vector<2x16x32xi1>, vector<2x16x32xf32>
      %c0_21 = arith.constant 0 : index
      %c0_22 = arith.constant 0 : index
      %c0_23 = arith.constant 0 : index
      %48 = vector.load %arg7[%c0_21, %c0_22, %c0_23] : memref<2x1x1xf32, #tpu.memory_space<vmem>>, vector<2x1x1xf32>
      %cst_24 = arith.constant dense<0.000000e+00> : vector<2x1xf32>
      %49 = vector.multi_reduction <add>, %43, %cst_24 [1] : vector<2x16x1xf32> to vector<2x1xf32>
      %50 = vector.shape_cast %49 : vector<2x1xf32> to vector<2x1x1xf32>
      %51 = arith.addf %48, %50 : vector<2x1x1xf32>
      %c0_25 = arith.constant 0 : index
      %c0_26 = arith.constant 0 : index
      %c0_27 = arith.constant 0 : index
      %52 = vector.load %arg7[%c0_25, %c0_26, %c0_27] : memref<2x1x1xf32, #tpu.memory_space<vmem>>, vector<2x1x1xf32>
      tpu.vector_store %arg7[%c0_25, %c0_26, %c0_27], %51 {strides = array<i32>} : memref<2x1x1xf32, #tpu.memory_space<vmem>>, vector<2x1x1xf32>,
      %c0_28 = arith.constant 0 : index
      %c0_29 = arith.constant 0 : index
      %c0_30 = arith.constant 0 : index
      %53 = vector.load %arg6[%c0_28, %c0_29, %c0_30] : memref<2x1x32xf32, #tpu.memory_space<vmem>>, vector<2x1x32xf32>
      %cst_31 = arith.constant dense<0.000000e+00> : vector<2x32xf32>
      %54 = vector.multi_reduction <add>, %47, %cst_31 [1] : vector<2x16x32xf32> to vector<2x32xf32>
      %55 = vector.shape_cast %54 : vector<2x32xf32> to vector<2x1x32xf32>
      %56 = arith.addf %53, %55 : vector<2x1x32xf32>
      %c0_32 = arith.constant 0 : index
      %c0_33 = arith.constant 0 : index
      %c0_34 = arith.constant 0 : index
      %57 = vector.load %arg6[%c0_32, %c0_33, %c0_34] : memref<2x1x32xf32, #tpu.memory_space<vmem>>, vector<2x1x32xf32>
      tpu.vector_store %arg6[%c0_32, %c0_33, %c0_34], %56 {strides = array<i32>} : memref<2x1x32xf32, #tpu.memory_space<vmem>>, vector<2x1x32xf32>,
    } else {
    }
    %c1_i32_8 = arith.constant 1 : i32
    %14 = arith.cmpi eq, %arg1, %c1_i32_8 : i32
    %15 = arith.extui %14 : i1 to i32
    %c0_i32_9 = arith.constant 0 : i32
    %16 = arith.cmpi ne, %15, %c0_i32_9 : i32
    scf.if %16 {
      %c0_13 = arith.constant 0 : index
      %c0_14 = arith.constant 0 : index
      %c0_15 = arith.constant 0 : index
      %22 = vector.load %arg6[%c0_13, %c0_14, %c0_15] : memref<2x1x32xf32, #tpu.memory_space<vmem>>, vector<2x1x32xf32>
      %23 = vector.broadcast %22 : vector<2x1x32xf32> to vector<2x16x32xf32>
      %24 = arith.subf %0, %23 : vector<2x16x32xf32>
      %25 = arith.mulf %24, %24 : vector<2x16x32xf32>
      %cst = arith.constant dense<0.000000e+00> : vector<2x16xf32>
      %26 = vector.multi_reduction <add>, %25, %cst [2] : vector<2x16x32xf32> to vector<2x16xf32>
      %27 = vector.shape_cast %26 : vector<2x16xf32> to vector<2x16x1xf32>
      %cst_16 = arith.constant 3.200000e+01 : f32
      %28 = vector.broadcast %cst_16 : f32 to vector<2x16x1xf32>
      %29 = arith.divf %27, %28 : vector<2x16x1xf32>
      %30 = math.sqrt %29 : vector<2x16x1xf32>
      %c0_i32_17 = arith.constant 0 : i32
      %31 = arith.addi %arg2, %c0_i32_17 : i32
      %c16_i32 = arith.constant 16 : i32
      %32 = arith.muli %31, %c16_i32 : i32
      %33 = tpu.iota {dimensions = array<i32: 1>} : vector<1x16x1xi32>
      %34 = vector.broadcast %32 : i32 to vector<1x16x1xi32>
      %35 = arith.addi %34, %33 : vector<1x16x1xi32>
      %c2_i32 = arith.constant 2 : i32
      %36 = vector.broadcast %c2_i32 : i32 to vector<1x16x1xi32>
      %37 = arith.cmpi sge, %35, %36 : vector<1x16x1xi32>
      %c16_i32_18 = arith.constant 16 : i32
      %38 = vector.broadcast %c16_i32_18 : i32 to vector<1x16x1xi32>
      %39 = arith.cmpi slt, %35, %38 : vector<1x16x1xi32>
      %40 = arith.andi %37, %39 : vector<1x16x1xi1>
      %cst_19 = arith.constant 0.000000e+00 : f32
      %41 = vector.shape_cast %40 : vector<1x16x1xi1> to vector<1x16x1xi1>
      %42 = vector.broadcast %41 : vector<1x16x1xi1> to vector<2x16x1xi1>
      %43 = vector.broadcast %cst_19 : f32 to vector<2x16x1xf32>
      %44 = arith.select %42, %30, %43 : vector<2x16x1xi1>, vector<2x16x1xf32>
      %c0_20 = arith.constant 0 : index
      %c0_21 = arith.constant 0 : index
      %c0_22 = arith.constant 0 : index
      %45 = vector.load %arg8[%c0_20, %c0_21, %c0_22] : memref<2x1x1xf32, #tpu.memory_space<vmem>>, vector<2x1x1xf32>
      %cst_23 = arith.constant dense<0.000000e+00> : vector<2x1xf32>
      %46 = vector.multi_reduction <add>, %44, %cst_23 [1] : vector<2x16x1xf32> to vector<2x1xf32>
      %47 = vector.shape_cast %46 : vector<2x1xf32> to vector<2x1x1xf32>
      %48 = arith.addf %45, %47 : vector<2x1x1xf32>
      %c0_24 = arith.constant 0 : index
      %c0_25 = arith.constant 0 : index
      %c0_26 = arith.constant 0 : index
      %49 = vector.load %arg8[%c0_24, %c0_25, %c0_26] : memref<2x1x1xf32, #tpu.memory_space<vmem>>, vector<2x1x1xf32>
      tpu.vector_store %arg8[%c0_24, %c0_25, %c0_26], %48 {strides = array<i32>} : memref<2x1x1xf32, #tpu.memory_space<vmem>>, vector<2x1x1xf32>,
    } else {
    }
    %c1_i32_10 = arith.constant 1 : i32
    %17 = arith.cmpi eq, %arg1, %c1_i32_10 : i32
    %c0_i32_11 = arith.constant 0 : i32
    %18 = arith.cmpi eq, %arg2, %c0_i32_11 : i32
    %19 = arith.andi %17, %18 : i1
    %20 = arith.extui %19 : i1 to i32
    %c0_i32_12 = arith.constant 0 : i32
    %21 = arith.cmpi ne, %20, %c0_i32_12 : i32
    scf.if %21 {
      %c0_13 = arith.constant 0 : index
      %c0_14 = arith.constant 0 : index
      %c0_15 = arith.constant 0 : index
      %22 = vector.load %arg7[%c0_13, %c0_14, %c0_15] : memref<2x1x1xf32, #tpu.memory_space<vmem>>, vector<2x1x1xf32>
      %c0_16 = arith.constant 0 : index
      %c0_17 = arith.constant 0 : index
      %c0_18 = arith.constant 0 : index
      %23 = vector.load %arg8[%c0_16, %c0_17, %c0_18] : memref<2x1x1xf32, #tpu.memory_space<vmem>>, vector<2x1x1xf32>
      %24 = arith.divf %22, %23 : vector<2x1x1xf32>
      %c0_19 = arith.constant 0 : index
      %c0_20 = arith.constant 0 : index
      %c0_21 = arith.constant 0 : index
      %25 = vector.load %arg5[%c0_19, %c0_20, %c0_21] : memref<2x1x1xf32, #tpu.memory_space<vmem>>, vector<2x1x1xf32>
      tpu.vector_store %arg5[%c0_19, %c0_20, %c0_21], %24 {strides = array<i32>} : memref<2x1x1xf32, #tpu.memory_space<vmem>>, vector<2x1x1xf32>,
    } else {
    }
    return
  }
  func.func @transform_0(%arg0: i32, %arg1: i32, %arg2: i32) -> (i32, i32, i32) {
    %c0_i32 = arith.constant 0 : i32
    %0 = arith.addi %arg2, %c0_i32 : i32
    %c0_i32_0 = arith.constant 0 : i32
    %c0_i32_1 = arith.constant 0 : i32
    return %arg0, %0, %c0_i32_0 : i32, i32, i32
  }
  func.func @transform_1(%arg0: i32, %arg1: i32, %arg2: i32) -> (i32, i32, i32) {
    %c1_i32 = arith.constant 1 : i32
    %0 = arith.subi %c1_i32, %arg1 : i32
    %1 = arith.muli %arg2, %0 : i32
    %c0_i32 = arith.constant 0 : i32
    %2 = arith.addi %c0_i32, %1 : i32
    %c0_i32_0 = arith.constant 0 : i32
    %3 = arith.muli %c0_i32_0, %arg1 : i32
    %4 = arith.addi %2, %3 : i32
    %c0_i32_1 = arith.constant 0 : i32
    %c0_i32_2 = arith.constant 0 : i32
    return %arg0, %4, %c0_i32_1 : i32, i32, i32
  }
  func.func @transform_2(%arg0: i32, %arg1: i32, %arg2: i32) -> (i32, i32, i32) {
    %c0_i32 = arith.constant 0 : i32
    %c0_i32_0 = arith.constant 0 : i32
    %c0_i32_1 = arith.constant 0 : i32
    return %arg0, %c0_i32, %c0_i32_0 : i32, i32, i32
  }
}

</mosaic_0001>

<llo_original>
// kernel: tpu_custom_call.1
$region0: #{tpu_custom_call.1}
  #allocation0 [shape = 'u32[]', space=smem, size = 0x4, offset = 0x4, fixed_abs, tag = 'smem constant byte address 0x4 - core index']
  #allocation1 [shape = 'u32[144,128]{1,0:T(1,128)}', space=vmem, size = 0x12000, scoped, tag = 'internal scratch']
  #allocation2 [shape = 'f32[2,1,32]{2,1,0:T(1,128)}', space=vmem, size = 0x400, scoped, tag = 'scratch operand']
  #allocation3 [shape = 'f32[2,1,1]{2,1,0:T(1,128)}', space=vmem, size = 0x400, scoped, tag = 'scratch operand']
  #allocation4 [shape = 'f32[2,1,1]{2,1,0:T(1,128)}', space=vmem, size = 0x400, scoped, tag = 'scratch operand']
  %s0 = inlined_call_operand.hbm [shape: f32[2,16,32], index: 0, kind: input, shape index: {}]
  %s1 = inlined_call_operand.hbm [shape: f32[2,16,32], index: 1, kind: input, shape index: {}]
  %s2 = inlined_call_operand.vmem [shape: f32[2,1,1], index: 2, kind: output, shape index: {}]
  %s3 = sld [smem:[#allocation0]]
  $region69: #{tpu_custom_call.1} parent=0
    _
  %s5 = ssub.s32 1, %s3
  %s6 = scalar_select 0, %s5, %s3
  $region1: #{tpu_custom_call.1} parent=0
    #allocation5 [shape = 'u8[16384]{0}', space=vmem, size = 0x4000, scoped, tag = 'input window, operand 0, single buffered']
    #allocation6 [shape = 's32[2]{0}', space=sflag, size = 0x8, scoped, tag = 'scoped memory for tpu_custom_call.1']
    #allocation7 [shape = 'u8[32768]{0}', space=vmem, size = 0x8000, scoped, tag = 'input window, operand 1']
    #allocation8 [shape = 's32[2]{0}', space=sflag, size = 0x8, scoped, tag = 'scoped memory for tpu_custom_call.1']
    %7 = vsyncpa [#allocation6], 0
    %8 = vsyncpa [#allocation8], 0
    %s9 = scalar_lea.sflag [#allocation8], 1
    %10 = vsyncpa %s9, 0
    loop: start=0, step=1, limit=4
    $region2: #{tpu_custom_call.1} parent=1 // loop_pre_header
      _
    $region3: #{tpu_custom_call.1} parent=1 // loop_header
      %s12 = sphi 0, %s16
      %p13 = scmp.ge.s32.totalorder %s12, 4
      %s19 = sphi 0, %s38
      %s20 = sphi 0, %s34
      %s21 = sphi 0, %s30
      %s22 = sphi 0, %s19
      %s23 = sphi 0, %s20
      %s24 = sphi 0, %s21
      %s25 = sphi 0, %s22
      %s26 = sphi 0, %s23
      %s27 = sphi 0, %s24
      %s43 = sphi 0, %s45
      %s46 = sphi 0, %s43
      %s47 = sphi 0, %s46
      %s63 = sphi 0, %s47
      %s75 = sphi 0, %s77
      %s78 = sphi 0, %s75
      %s79 = sphi 0, %s78
      %s95 = sphi 0, %s79
      %s101 = sphi 0, %s103
      %s104 = sphi 0, %s101
      %s105 = sphi 0, %s104
      %s121 = sphi 0, %s105
    $region4: #{tpu_custom_call.1} parent=1 // loop_header_branch
      %15 = sbr.rel (%p13) target = $region8
    $region5: #{tpu_custom_call.1} parent=1 // loop_body
      %s17 = ssub.s32 %s12, 1
      %s18 = ssub.s32 %s12, 2
      %s28 = sadd.s32 1, %s21
      %p29 = scmp.ge.s32.totalorder %s28, 1
      %s30 = scalar_select %p29, 0, %s28
      %s31 = sadd.s32 1, %s20
      %s32 = scalar_select %p29, %s31, %s20
      %p33 = scmp.ge.s32.totalorder %s32, 2
      %s34 = scalar_select %p33, 0, %s32
      %s35 = sadd.s32 1, %s19
      %s36 = scalar_select %p33, %s35, %s19
      %p37 = scmp.ge.s32.totalorder %s36, 1
      %s38 = scalar_select %p37, 0, %s36
      %s39 = ssub.s32 %s19, %s38
      %s40 = ssub.s32 %s21, %s30
      %s41 = sor.u32 %s39, %s40
      %p42 = scmp.eq.s32.totalorder %s41, 0
      %s44 = sadd.s32 %s43, 1
      %s45 = scalar_select %p42, %s43, %s44
      %p48 = pneg %p42
      %p49 = scmp.eq.s32.totalorder %s12, 1
      %p50 = por %p48, %p49
      %p51 = scmp.ne.s32.totalorder %s43, %s46
      %p52 = scmp.eq.s32.totalorder %s12, 0
      %p53 = por %p51, %p52
      %p54 = scmp.ne.s32.totalorder %s43, %s46
      %p55 = scmp.eq.s32.totalorder %s17, 1
      %p56 = por %p54, %p55
      %p57 = scmp.ne.s32.totalorder %s46, %s47
      %p58 = scmp.eq.s32.totalorder %s17, 0
      %p59 = por %p57, %p58
      %p60 = scmp.ne.s32.totalorder %s46, %s47
      %p61 = scmp.eq.s32.totalorder %s18, 1
      %p62 = por %p60, %p61
      %p64 = scmp.ne.s32.totalorder %s47, %s63
      %p65 = scmp.eq.s32.totalorder %s18, 0
      %p66 = por %p64, %p65
      %s67 = ssub.s32 1, %s20
      %s68 = smul.u32 %s21, %s67
      %s69 = ssub.s32 1, %s34
      %s70 = smul.u32 %s30, %s69
      %s71 = ssub.s32 %s19, %s38
      %s72 = ssub.s32 %s68, %s70
      %s73 = sor.u32 %s71, %s72
      %p74 = scmp.eq.s32.totalorder %s73, 0
      %s76 = sadd.s32 %s75, 1
      %s77 = scalar_select %p74, %s75, %s76
      %p80 = pneg %p74
      %p81 = scmp.eq.s32.totalorder %s12, 1
      %p82 = por %p80, %p81
      %p83 = scmp.ne.s32.totalorder %s75, %s78
      %p84 = scmp.eq.s32.totalorder %s12, 0
      %p85 = por %p83, %p84
      %p86 = scmp.ne.s32.totalorder %s75, %s78
      %p87 = scmp.eq.s32.totalorder %s17, 1
      %p88 = por %p86, %p87
      %p89 = scmp.ne.s32.totalorder %s78, %s79
      %p90 = scmp.eq.s32.totalorder %s17, 0
      %p91 = por %p89, %p90
      %p92 = scmp.ne.s32.totalorder %s78, %s79
      %p93 = scmp.eq.s32.totalorder %s18, 1
      %p94 = por %p92, %p93
      %p96 = scmp.ne.s32.totalorder %s79, %s95
      %p97 = scmp.eq.s32.totalorder %s18, 0
      %p98 = por %p96, %p97
      %s99 = ssub.s32 %s19, %s38
      %p100 = scmp.eq.s32.totalorder %s99, 0
      %s102 = sadd.s32 %s101, 1
      %s103 = scalar_select %p100, %s101, %s102
      %p106 = pneg %p100
      %p107 = scmp.eq.s32.totalorder %s12, 1
      %p108 = por %p106, %p107
      %p109 = scmp.ne.s32.totalorder %s101, %s104
      %p110 = scmp.eq.s32.totalorder %s12, 0
      %p111 = por %p109, %p110
      %p112 = scmp.ne.s32.totalorder %s101, %s104
      %p113 = scmp.eq.s32.totalorder %s17, 1
      %p114 = por %p112, %p113
      %p115 = scmp.ne.s32.totalorder %s104, %s105
      %p116 = scmp.eq.s32.totalorder %s17, 0
      %p117 = por %p115, %p116
      %p118 = scmp.ne.s32.totalorder %s104, %s105
      %p119 = scmp.eq.s32.totalorder %s18, 1
      %p120 = por %p118, %p119
      %p122 = scmp.ne.s32.totalorder %s105, %s121
      %p123 = scmp.eq.s32.totalorder %s18, 0
      %p124 = por %p122, %p123
      %p125 = scmp.le.s32.totalorder 1, %s12
      %p126 = scmp.lt.s32.totalorder %s12, 3
      %p127 = pnand %p125, %p126
      %p128 = pneg %p127
      // Predicated region
      $region9: #{tpu_custom_call.1} parent=5 // pred_check
        _
      $region10: #{tpu_custom_call.1} parent=5 // pred_check_branch
        %130 = sbr.rel (%p127) target = $region12
      $region11: #{tpu_custom_call.1} parent=5 // pred_region
        %s131 = ssub.s32 %s12, 1
        // Predicated region
        $region13: #{tpu_custom_call.1} parent=11 // pred_check
          %p132 = pneg %p59
        $region14: #{tpu_custom_call.1} parent=11 // pred_check_branch
          %134 = sbr.rel (%p132) target = $region16
        $region15: #{tpu_custom_call.1} parent=11 // pred_region
          %s135 = smul.u32 2, %s22
          %s136 = smul.u32 2, %s24
          %s138 = ssub.s32 512, 512
          %139 = vsyncadd [#allocation6], %s138
          %s140 = smul.addr %s135, 2
          %s141 = sadd.s32 %s136, %s140
          %s142 = smul.addr %s141, 128
          %s143 = scalar_lea.hbm %s0, %s142
          %s144 = sshll.u32 [#allocation5], 4
          %s145 = int_to_ptr.vmem [resolvable:$true] %s144
          %150 = dma.hbm_to_vmem [thread:$0]  %s143, 512, %s145, [#allocation6], 128, 128, 8
        $region16: #{tpu_custom_call.1} parent=11 // pred_fallthru
          _
      $region12: #{tpu_custom_call.1} parent=5 // pred_fallthru
        _
      %p151 = scmp.lt.s32.totalorder %s12, 2
      // Predicated region
      $region17: #{tpu_custom_call.1} parent=5 // pred_check
        %p152 = pneg %p151
      $region18: #{tpu_custom_call.1} parent=5 // pred_check_branch
        %154 = sbr.rel (%p152) target = $region20
      $region19: #{tpu_custom_call.1} parent=5 // pred_region
        // Predicated region
        $region21: #{tpu_custom_call.1} parent=19 // pred_check
          %p155 = pneg %p85
        $region22: #{tpu_custom_call.1} parent=19 // pred_check_branch
          %157 = sbr.rel (%p155) target = $region24
        $region23: #{tpu_custom_call.1} parent=19 // pred_region
          %s158 = sand.u32 %s75, 1
          %s159 = scalar_lea.sflag [#allocation8], %s158
          %s160 = sand.u32 %s75, 1
          %s161 = smul.addr %s160, 32
          %s162 = scalar_lea.vmem [#allocation7], %s161
          %s163 = ssub.s32 1, %s20
          %s164 = smul.u32 %s21, %s163
          %s165 = smul.u32 2, %s19
          %s166 = smul.u32 2, %s164
          %s168 = ssub.s32 512, 512
          %169 = vsyncadd %s159, %s168
          %s170 = smul.addr %s165, 2
          %s171 = sadd.s32 %s166, %s170
          %s172 = smul.addr %s171, 128
          %s173 = scalar_lea.hbm %s1, %s172
          %s174 = sshll.u32 %s162, 4
          %s175 = int_to_ptr.vmem [resolvable:$true] %s174
          %180 = dma.hbm_to_vmem [thread:$0]  %s173, 512, %s175, %s159, 128, 128, 8
        $region24: #{tpu_custom_call.1} parent=19 // pred_fallthru
          _
      $region20: #{tpu_custom_call.1} parent=5 // pred_fallthru
        _
      %p181 = scmp.le.s32.totalorder 1, %s12
      %p182 = scmp.lt.s32.totalorder %s12, 3
      %p183 = pnand %p181, %p182
      %p184 = pneg %p183
      // Predicated region
      $region25: #{tpu_custom_call.1} parent=5 // pred_check
        _
      $region26: #{tpu_custom_call.1} parent=5 // pred_check_branch
        %186 = sbr.rel (%p183) target = $region28
      $region27: #{tpu_custom_call.1} parent=5 // pred_region
        %s187 = ssub.s32 %s12, 1
        // Predicated region
        $region29: #{tpu_custom_call.1} parent=27 // pred_check
          %p188 = pneg %p59
        $region30: #{tpu_custom_call.1} parent=27 // pred_check_branch
          %190 = sbr.rel (%p188) target = $region32
        $region31: #{tpu_custom_call.1} parent=27 // pred_region
          %191 = dma.done [#allocation6], 512
        $region32: #{tpu_custom_call.1} parent=27 // pred_fallthru
          _
        %s192 = sand.u32 %s78, 1
        %s193 = scalar_lea.sflag [#allocation8], %s192
        %s194 = sand.u32 %s78, 1
        %s195 = smul.addr %s194, 32
        %s196 = scalar_lea.vmem [#allocation7], %s195
        // Predicated region
        $region33: #{tpu_custom_call.1} parent=27 // pred_check
          %p197 = pneg %p91
        $region34: #{tpu_custom_call.1} parent=27 // pred_check_branch
          %199 = sbr.rel (%p197) target = $region36
        $region35: #{tpu_custom_call.1} parent=27 // pred_region
          %200 = dma.done %s193, 512
        $region36: #{tpu_custom_call.1} parent=27 // pred_fallthru
          _
        %p201 = pneg %p59
        %p202 = pneg %p56
        %s203 = sand.u32 %s78, 1
        %s204 = scalar_lea.sflag [#allocation8], %s203
        %s205 = sand.u32 %s78, 1
        %s206 = smul.addr %s205, 32
        %s207 = scalar_lea.vmem [#allocation7], %s206
        %p208 = pneg %p91
        %p209 = pneg %p88
        %p210 = pneg %p117
        %p211 = pneg %p114
        %s212 = smul.u32 2, %s22
        %p213 = scmp.lt.s32.totalorder %s212, 1
        %s214 = scalar_select %p213, %s212, 1
        %s215 = scalar_lea.vmem %s2, %s214
        %s216 = smul.u32 2, %s22
        %s217 = smul.u32 2, %s24
        %s218 = ssub.s32 1, %s23
        %s219 = smul.u32 %s24, %s218
        %s220 = smul.u32 2, %s22
        %s221 = smul.u32 2, %s219
        %s222 = smul.u32 2, %s22
        %p223 = scmp.lt.s32.totalorder %s222, 1
        %s224 = scalar_select %p223, %s222, 1
        %s225 = scalar_lea.vmem %s2, %s224
        %s226 = smul.u32 2, %s22
        %v227 = vld [vmem:[#allocation5] sm:$0xff]
        %v228 = vld [vmem:[#allocation5 + $0x8] sm:$0xff]
        %v229 = vld [vmem:[#allocation5 + $0x10] sm:$0xff]
        %v230 = vld [vmem:[#allocation5 + $0x18] sm:$0xff]
        %p231 = scmp.eq.s32.totalorder %s23, 0
        %p232 = scmp.eq.s32.totalorder %s24, 0
        %p233 = pnand %p231, %p232
        %p234 = pneg %p233
        // Predicated region
        $region37: #{tpu_custom_call.1} parent=27 // pred_check
          _
        $region38: #{tpu_custom_call.1} parent=27 // pred_check_branch
          %236 = sbr.rel (%p233) target = $region40
        $region39: #{tpu_custom_call.1} parent=27 // pred_region
          %vm237 = vcmask 253952
          %238 = vst.msk [vmem:[#allocation2] sm:$0x1] %vm237, 0.0
          %239 = vst.msk [vmem:[#allocation2 + $0x1] sm:$0x1] %vm237, 0.0
          %vm240 = vcmask 0
          %241 = vst.msk [vmem:[#allocation3] sm:$0x1] %vm240, 0.0
          %242 = vst.msk [vmem:[#allocation3 + $0x1] sm:$0x1] %vm240, 0.0
        $region40: #{tpu_custom_call.1} parent=27 // pred_fallthru
          _
        %p243 = scmp.eq.s32.totalorder %s23, 1
        %p244 = pnand %p243, %p232
        %p245 = pneg %p244
        // Predicated region
        $region41: #{tpu_custom_call.1} parent=27 // pred_check
          _
        $region42: #{tpu_custom_call.1} parent=27 // pred_check_branch
          %247 = sbr.rel (%p244) target = $region44
        $region43: #{tpu_custom_call.1} parent=27 // pred_region
          %vm248 = vcmask 0
          %249 = vst.msk [vmem:[#allocation4] sm:$0x1] %vm248, 0.0
          %250 = vst.msk [vmem:[#allocation4 + $0x1] sm:$0x1] %vm248, 0.0
          %v251 = vld [vmem:[#allocation2] sm:$0x1]
          %v252 = vld [vmem:[#allocation2 + $0x1] sm:$0x1]
          %v253 = vmul.f32 %v251, 0.071428575
          %v254 = vmul.f32 %v252, 0.071428575
          %vm255 = vcmask 253952
          %256 = vst.msk [vmem:[#allocation2] sm:$0x1] %vm255, %v253
          %257 = vst.msk [vmem:[#allocation2 + $0x1] sm:$0x1] %vm255, %v254
        $region44: #{tpu_custom_call.1} parent=27 // pred_fallthru
          _
        // Predicated region
        $region45: #{tpu_custom_call.1} parent=27 // pred_check
          %p258 = pneg %p231
        $region46: #{tpu_custom_call.1} parent=27 // pred_check_branch
          %260 = sbr.rel (%p258) target = $region48
        $region47: #{tpu_custom_call.1} parent=27 // pred_region
          %v261 = vld [vmem:[%s196] sm:$0xff]
          %v262 = vld [vmem:[%s196 + $0x8] sm:$0xff]
          %v263 = vld [vmem:[%s196 + $0x10] sm:$0xff]
          %v264 = vld [vmem:[%s196 + $0x18] sm:$0xff]
          %v265 = vsub.f32 %v227, %v261
          %v266 = vsub.f32 %v228, %v262
          %v267 = vsub.f32 %v229, %v263
          %v268 = vsub.f32 %v230, %v264
          %v269 = vmul.f32 %v265, %v265
          %v270 = vmul.f32 %v266, %v266
          %v271 = vmul.f32 %v267, %v267
          %v272 = vmul.f32 %v268, %v268
          %vm273 = vcmask 261120
          %v274 = vsel %vm273, %v269, 0.0
          %275 = vadd.xlane.f32.xlu0 %v274
          %v276 = vpop.xlane.xlu0 %275
          %v277 = vsel %vm273, %v270, 0.0
          %278 = vadd.xlane.f32.xlu0 %v277
          %v279 = vpop.xlane.xlu0 %278
          %v280 = vsel %vm273, %v271, 0.0
          %281 = vadd.xlane.f32.xlu0 %v280
          %v282 = vpop.xlane.xlu0 %281
          %v283 = vsel %vm273, %v272, 0.0
          %284 = vadd.xlane.f32.xlu0 %v283
          %v285 = vpop.xlane.xlu0 %284
          %v286 = vrcp.pop 32.0
          %v287 = vmul.f32 %v276, %v286
          %v288 = vmul.f32 %v279, %v286
          %v289 = vmul.f32 %v282, %v286
          %v290 = vmul.f32 %v285, %v286
          %v291 = vrsqrt.pop %v287
          %v292 = vmul.f32 %v287, %v291
          %vm293 = vcmp.eq.f32.partialorder %v287, inf
          %v294 = vsel %vm293, %v287, %v292
          %vm295 = vcmp.eq.f32.partialorder %v287, 0.0
          %v296 = vand.u32 %v287, 2147483648
          %v297 = vsel %vm295, %v296, %v294
          %v298 = vrsqrt.pop %v288
          %v299 = vmul.f32 %v288, %v298
          %vm300 = vcmp.eq.f32.partialorder %v288, inf
          %v301 = vsel %vm300, %v288, %v299
          %vm302 = vcmp.eq.f32.partialorder %v288, 0.0
          %v303 = vand.u32 %v288, 2147483648
          %v304 = vsel %vm302, %v303, %v301
          %v305 = vrsqrt.pop %v289
          %v306 = vmul.f32 %v289, %v305
          %vm307 = vcmp.eq.f32.partialorder %v289, inf
          %v308 = vsel %vm307, %v289, %v306
          %vm309 = vcmp.eq.f32.partialorder %v289, 0.0
          %v310 = vand.u32 %v289, 2147483648
          %v311 = vsel %vm309, %v310, %v308
          %v312 = vrsqrt.pop %v290
          %v313 = vmul.f32 %v290, %v312
          %vm314 = vcmp.eq.f32.partialorder %v290, inf
          %v315 = vsel %vm314, %v290, %v313
          %vm316 = vcmp.eq.f32.partialorder %v290, 0.0
          %v317 = vand.u32 %v290, 2147483648
          %v318 = vsel %vm316, %v317, %v315
          %s319 = smul.u32 %s24, 16
          %v320 = vlaneseq
          %v321 = vshrl.u32 %v320, 7
          %v322 = vadd.s32 %v321, 8
          %v323 = vstv %s319
          %v324 = vadd.s32 %v323, %v321
          %v325 = vadd.s32 %v323, %v322
          %vm326 = vcmp.ge.s32.totalorder %v324, 2
          %vm327 = vcmp.ge.s32.totalorder %v325, 2
          %vm328 = vcmp.lt.s32.totalorder %v324, 16
          %vm329 = vcmp.lt.s32.totalorder %v325, 16
          %vm330 = vmand %vm326, %vm328
          %vm331 = vmand %vm327, %vm329
          %v332 = vsel %vm330, 1, 0
          %v333 = vsel %vm331, 1, 0
          %vm334 = vcmp.eq.s32.totalorder %v332, 1
          %vm335 = vcmp.eq.s32.totalorder %v333, 1
          %v336 = vsel %vm334, %v297, 0.0
          %v337 = vsel %vm335, %v304, 0.0
          %v338 = vsel %vm334, %v311, 0.0
          %v339 = vsel %vm335, %v318, 0.0
          %v340 = vsel %vm334, %v227, 0.0
          %v341 = vsel %vm335, %v228, 0.0
          %v342 = vsel %vm334, %v229, 0.0
          %v343 = vsel %vm335, %v230, 0.0
          %v344 = vld [vmem:[#allocation3] sm:$0x1]
          %v345 = vld [vmem:[#allocation3 + $0x1] sm:$0x1]
          %v346 = vadd.f32 %v336, %v337
          %v347 = vrot.slane %v346, 4
          %v348 = vadd.f32 %v346, %v347
          %v349 = vrot.slane %v348, 2
          %v350 = vadd.f32 %v348, %v349
          %v351 = vrot.slane %v350, 1
          %v352 = vadd.f32 %v350, %v351
          %v353 = vadd.f32 %v338, %v339
          %v354 = vrot.slane %v353, 4
          %v355 = vadd.f32 %v353, %v354
          %v356 = vrot.slane %v355, 2
          %v357 = vadd.f32 %v355, %v356
          %v358 = vrot.slane %v357, 1
          %v359 = vadd.f32 %v357, %v358
          %v360 = vadd.f32 %v344, %v352
          %v361 = vadd.f32 %v345, %v359
          %vm362 = vcmask 0
          %363 = vst.msk [vmem:[#allocation3] sm:$0x1] %vm362, %v360
          %364 = vst.msk [vmem:[#allocation3 + $0x1] sm:$0x1] %vm362, %v361
          %v365 = vld [vmem:[#allocation2] sm:$0x1]
          %v366 = vld [vmem:[#allocation2 + $0x1] sm:$0x1]
          %v367 = vsel %vm273, %v340, 0.0
          %v368 = vsel %vm273, %v341, 0.0
          %v369 = vadd.f32 %v367, %v368
          %v370 = vrot.slane %v369, 4
          %v371 = vadd.f32 %v369, %v370
          %v372 = vrot.slane %v371, 2
          %v373 = vadd.f32 %v371, %v372
          %v374 = vrot.slane %v373, 1
          %v375 = vadd.f32 %v373, %v374
          %v376 = vsel %vm273, %v342, 0.0
          %v377 = vsel %vm273, %v343, 0.0
          %v378 = vadd.f32 %v376, %v377
          %v379 = vrot.slane %v378, 4
          %v380 = vadd.f32 %v378, %v379
          %v381 = vrot.slane %v380, 2
          %v382 = vadd.f32 %v380, %v381
          %v383 = vrot.slane %v382, 1
          %v384 = vadd.f32 %v382, %v383
          %v385 = vadd.f32 %v365, %v375
          %v386 = vadd.f32 %v366, %v384
          %vm387 = vcmask 253952
          %388 = vst.msk [vmem:[#allocation2] sm:$0x1] %vm387, %v385
          %389 = vst.msk [vmem:[#allocation2 + $0x1] sm:$0x1] %vm387, %v386
        $region48: #{tpu_custom_call.1} parent=27 // pred_fallthru
          _
        // Predicated region
        $region49: #{tpu_custom_call.1} parent=27 // pred_check
          %p390 = pneg %p243
        $region50: #{tpu_custom_call.1} parent=27 // pred_check_branch
          %392 = sbr.rel (%p390) target = $region52
        $region51: #{tpu_custom_call.1} parent=27 // pred_region
          %v393 = vld [vmem:[#allocation2] sm:$0x1]
          %v394 = vld [vmem:[#allocation2 + $0x1] sm:$0x1]
          %v397 = vlaneseq
          %v398 = vshrl.u32 %v397, 7
          %v399 = vsub.s32 0, %v398
          %v400 = vrot.slane %v393, %v399
          %v401 = vlaneseq
          %v402 = vshrl.u32 %v401, 7
          %v403 = vsub.s32 0, %v402
          %v404 = vrot.slane %v394, %v403
          %v407 = vsub.f32 %v227, %v400
          %v408 = vsub.f32 %v228, %v400
          %v409 = vsub.f32 %v229, %v404
          %v410 = vsub.f32 %v230, %v404
          %v411 = vmul.f32 %v407, %v407
          %v412 = vmul.f32 %v408, %v408
          %v413 = vmul.f32 %v409, %v409
          %v414 = vmul.f32 %v410, %v410
          %vm415 = vcmask 261120
          %v416 = vsel %vm415, %v411, 0.0
          %417 = vadd.xlane.f32.xlu0 %v416
          %v418 = vpop.xlane.xlu0 %417
          %v419 = vsel %vm415, %v412, 0.0
          %420 = vadd.xlane.f32.xlu0 %v419
          %v421 = vpop.xlane.xlu0 %420
          %v422 = vsel %vm415, %v413, 0.0
          %423 = vadd.xlane.f32.xlu0 %v422
          %v424 = vpop.xlane.xlu0 %423
          %v425 = vsel %vm415, %v414, 0.0
          %426 = vadd.xlane.f32.xlu0 %v425
          %v427 = vpop.xlane.xlu0 %426
          %v428 = vrcp.pop 32.0
          %v429 = vmul.f32 %v418, %v428
          %v430 = vmul.f32 %v421, %v428
          %v431 = vmul.f32 %v424, %v428
          %v432 = vmul.f32 %v427, %v428
          %v433 = vrsqrt.pop %v429
          %v434 = vmul.f32 %v429, %v433
          %vm435 = vcmp.eq.f32.partialorder %v429, inf
          %v436 = vsel %vm435, %v429, %v434
          %vm437 = vcmp.eq.f32.partialorder %v429, 0.0
          %v438 = vand.u32 %v429, 2147483648
          %v439 = vsel %vm437, %v438, %v436
          %v440 = vrsqrt.pop %v430
          %v441 = vmul.f32 %v430, %v440
          %vm442 = vcmp.eq.f32.partialorder %v430, inf
          %v443 = vsel %vm442, %v430, %v441
          %vm444 = vcmp.eq.f32.partialorder %v430, 0.0
          %v445 = vand.u32 %v430, 2147483648
          %v446 = vsel %vm444, %v445, %v443
          %v447 = vrsqrt.pop %v431
          %v448 = vmul.f32 %v431, %v447
          %vm449 = vcmp.eq.f32.partialorder %v431, inf
          %v450 = vsel %vm449, %v431, %v448
          %vm451 = vcmp.eq.f32.partialorder %v431, 0.0
          %v452 = vand.u32 %v431, 2147483648
          %v453 = vsel %vm451, %v452, %v450
          %v454 = vrsqrt.pop %v432
          %v455 = vmul.f32 %v432, %v454
          %vm456 = vcmp.eq.f32.partialorder %v432, inf
          %v457 = vsel %vm456, %v432, %v455
          %vm458 = vcmp.eq.f32.partialorder %v432, 0.0
          %v459 = vand.u32 %v432, 2147483648
          %v460 = vsel %vm458, %v459, %v457
          %s461 = smul.u32 %s24, 16
          %v462 = vlaneseq
          %v463 = vshrl.u32 %v462, 7
          %v464 = vadd.s32 %v463, 8
          %v465 = vstv %s461
          %v466 = vadd.s32 %v465, %v463
          %v467 = vadd.s32 %v465, %v464
          %vm468 = vcmp.ge.s32.totalorder %v466, 2
          %vm469 = vcmp.ge.s32.totalorder %v467, 2
          %vm470 = vcmp.lt.s32.totalorder %v466, 16
          %vm471 = vcmp.lt.s32.totalorder %v467, 16
          %vm472 = vmand %vm468, %vm470
          %vm473 = vmand %vm469, %vm471
          %v474 = vsel %vm472, 1, 0
          %v475 = vsel %vm473, 1, 0
          %vm476 = vcmp.eq.s32.totalorder %v474, 1
          %vm477 = vcmp.eq.s32.totalorder %v475, 1
          %v478 = vsel %vm476, %v439, 0.0
          %v479 = vsel %vm477, %v446, 0.0
          %v480 = vsel %vm476, %v453, 0.0
          %v481 = vsel %vm477, %v460, 0.0
          %v482 = vld [vmem:[#allocation4] sm:$0x1]
          %v483 = vld [vmem:[#allocation4 + $0x1] sm:$0x1]
          %v484 = vadd.f32 %v478, %v479
          %v485 = vrot.slane %v484, 4
          %v486 = vadd.f32 %v484, %v485
          %v487 = vrot.slane %v486, 2
          %v488 = vadd.f32 %v486, %v487
          %v489 = vrot.slane %v488, 1
          %v490 = vadd.f32 %v488, %v489
          %v491 = vadd.f32 %v480, %v481
          %v492 = vrot.slane %v491, 4
          %v493 = vadd.f32 %v491, %v492
          %v494 = vrot.slane %v493, 2
          %v495 = vadd.f32 %v493, %v494
          %v496 = vrot.slane %v495, 1
          %v497 = vadd.f32 %v495, %v496
          %v498 = vadd.f32 %v482, %v490
          %v499 = vadd.f32 %v483, %v497
          %vm500 = vcmask 0
          %501 = vst.msk [vmem:[#allocation4] sm:$0x1] %vm500, %v498
          %502 = vst.msk [vmem:[#allocation4 + $0x1] sm:$0x1] %vm500, %v499
        $region52: #{tpu_custom_call.1} parent=27 // pred_fallthru
          _
        // Predicated region
        $region53: #{tpu_custom_call.1} parent=27 // pred_check
          _
        $region54: #{tpu_custom_call.1} parent=27 // pred_check_branch
          %504 = sbr.rel (%p244) target = $region56
        $region55: #{tpu_custom_call.1} parent=27 // pred_region
          %v505 = vld [vmem:[#allocation3] sm:$0x1]
          %v506 = vld [vmem:[#allocation3 + $0x1] sm:$0x1]
          %v507 = vld [vmem:[#allocation4] sm:$0x1]
          %v508 = vld [vmem:[#allocation4 + $0x1] sm:$0x1]
          %v509 = vrcp.pop %v507
          %v510 = vmul.f32 %v505, %v509
          %v511 = vrcp.pop %v508
          %v512 = vmul.f32 %v506, %v511
          %vm513 = vcmask 0
          %514 = vst.msk [vmem:[%s225] sm:$0x1] %vm513, %v510
          %515 = vst.msk [vmem:[%s225 + $0x1] sm:$0x1] %vm513, %v512
        $region56: #{tpu_custom_call.1} parent=27 // pred_fallthru
          _
        %s516 = smul.u32 2, %s22
        %p517 = scmp.lt.s32.totalorder %s516, 1
        %s518 = scalar_select %p517, %s516, 1
        %s519 = scalar_lea.vmem %s2, %s518
        // Predicated region
        $region57: #{tpu_custom_call.1} parent=27 // pred_check
          %p520 = pneg %p114
        $region58: #{tpu_custom_call.1} parent=27 // pred_check_branch
          %522 = sbr.rel (%p520) target = $region60
        $region59: #{tpu_custom_call.1} parent=27 // pred_region
          %s523 = smul.u32 2, %s22
        $region60: #{tpu_custom_call.1} parent=27 // pred_fallthru
          _
        // Predicated region
        $region61: #{tpu_custom_call.1} parent=27 // pred_check
          %p524 = pneg %p114
        $region62: #{tpu_custom_call.1} parent=27 // pred_check_branch
          %526 = sbr.rel (%p524) target = $region64
        $region63: #{tpu_custom_call.1} parent=27 // pred_region
          %s527 = smul.u32 2, %s22
          %p528 = scmp.lt.s32.totalorder %s527, 1
          %s529 = scalar_select %p528, %s527, 1
          %s530 = scalar_lea.vmem %s2, %s529
        $region64: #{tpu_custom_call.1} parent=27 // pred_fallthru
          _
      $region28: #{tpu_custom_call.1} parent=5 // pred_fallthru
        _
      %p531 = scmp.le.s32.totalorder 2, %s12
      // Predicated region
      $region65: #{tpu_custom_call.1} parent=5 // pred_check
        %p532 = pneg %p531
      $region66: #{tpu_custom_call.1} parent=5 // pred_check_branch
        %534 = sbr.rel (%p532) target = $region68
      $region67: #{tpu_custom_call.1} parent=5 // pred_region
        %s535 = ssub.s32 %s12, 2
      $region68: #{tpu_custom_call.1} parent=5 // pred_fallthru
        _
    $region6: #{tpu_custom_call.1} parent=1 // loop_footer
      %s16 = sadd.s32 1, %s12
    $region7: #{tpu_custom_call.1} parent=1 // loop_footer_branch
      %11 = sbr.rel target = $region3
    $region8: #{tpu_custom_call.1} parent=1 // loop_exit
      _
    %536 = vsyncpa [#allocation6], 1
    %s537 = scalar_lea.sflag [#allocation6], 1
    %538 = vsyncpa %s537, 1
    %539 = vsyncpa [#allocation8], 1
    %s540 = scalar_lea.sflag [#allocation8], 1
    %541 = vsyncpa %s540, 1

</llo_original>
